<compile_context>
chip_gen: v7x
topology: tpu7x:2x2x1
jax: 0.10.0
libtpu: 0.0.40
codegen_flags: <defaults>
</compile_context>

<pallas_src>
import jax
import jax.numpy as jnp
from jax import lax
from jax.experimental import pallas as pl
from jax.experimental.pallas import tpu as pltpu

# ---------------- model hyperparameters (static) ----------------
INPUT_DIM = 16
HIDDEN_DIM = 32
OUTPUT_DIM = 4
N_HIDDEN = 2                 # number of hidden layers in self.hidden_layers
LEARN_HETERO = True          # produce the `noise` head as well
COMPUTE_DTYPE = jnp.bfloat16  # MXU input dtype (f32 accumulation)
OUT_DTYPE = jnp.bfloat16      # kernel writeback dtype (values come out of f32 accumulators)


def _round_up(x, m):
    return ((x + m - 1) // m) * m


def _vmem_capacity_bytes():
    try:
        return int(pltpu.get_tpu_info().vmem_capacity_bytes)
    except Exception:
        return 64 * 1024 * 1024          # v7x-safe fallback

_VMEM_CAP = _vmem_capacity_bytes()
# Scoped VMEM limit with headroom: v7x (64 MiB phys) -> 48 MiB; v5e/v6e (128 MiB) -> 96 MiB.
_VMEM_LIMIT = int(min(0.75 * _VMEM_CAP, 96 * 1024 * 1024))
# Batch-tile cap per generation (the batch-major x tile is still lane-padded in VMEM,
# so stay conservative on v7x's smaller VMEM; go bigger on v5e/v6e).
_TB_CAP = 8192 if _VMEM_CAP <= 64 * 1024 * 1024 else 16384


def _choose_tb(batch):
    """Batch tile: single tile for small batches; otherwise a multiple of 128
    (keeps the feature-major output block lane-aligned) with >=2 grid steps so
    both v7x TensorCores get work, capped by the per-generation VMEM budget."""
    if batch <= 256:
        return batch
    return min(_TB_CAP, _round_up(pl.cdiv(batch, 2), 128))


def fcnet_kernel(x_ref, w_in_ref, b_in_ref, w_h_ref, b_h_ref,
                 w_out_ref, b_out_ref, w_noise_ref, b_noise_ref,
                 out_ref, noise_ref):
    # ---- input layer: h^T = relu(W_in @ x^T + b_in) -------------------------
    # x_ref is the natural batch-major (tb, INPUT_DIM) bf16 tile; contract its
    # feature dim against W_in's feature dim (A @ B^T form, same pattern as
    # Q@K^T) -> result is feature-major (HIDDEN_DIM, tb), batch on the lanes.
    h = lax.dot_general(w_in_ref[...], x_ref[...],
                        (((1,), (1,)), ((), ())),
                        preferred_element_type=jnp.float32)
    h = jnp.maximum(h + b_in_ref[...], 0.0)          # bias (H,1) broadcasts over lanes

    # ---- hidden layers (identity dropout -> no-op), unrolled at trace time --
    for i in range(N_HIDDEN):
        h = jnp.dot(w_h_ref[i], h.astype(COMPUTE_DTYPE),
                    preferred_element_type=jnp.float32)
        h = jnp.maximum(h + b_h_ref[i], 0.0)

    hc = h.astype(COMPUTE_DTYPE)

    # ---- heads: feature-major (OUTPUT_DIM, tb), lane-dense bf16 stores ------
    out = jnp.dot(w_out_ref[...], hc, preferred_element_type=jnp.float32)
    out_ref[...] = (out + b_out_ref[...]).astype(out_ref.dtype)

    noise = jnp.dot(w_noise_ref[...], hc, preferred_element_type=jnp.float32)
    noise_ref[...] = (noise + b_noise_ref[...]).astype(noise_ref.dtype)


@jax.jit
def fcnet_forward(x, w_in, b_in, w_h, b_h, w_noise, b_noise, w_out, b_out):
    batch = x.shape[0]
    x = x.astype(COMPUTE_DTYPE)       # guarantee bf16 MXU path / halve X read bytes
    tb = _choose_tb(batch)
    grid = (pl.cdiv(batch, tb),)

    def resident(shape):
        n = len(shape)
        return pl.BlockSpec(shape, lambda i, _n=n: (0,) * _n)

    x_spec = pl.BlockSpec((tb, INPUT_DIM), lambda i: (i, 0))
    head_spec = pl.BlockSpec((OUTPUT_DIM, tb), lambda i: (0, i))

    flops = 2 * batch * (INPUT_DIM * HIDDEN_DIM
                         + N_HIDDEN * HIDDEN_DIM * HIDDEN_DIM
                         + 2 * HIDDEN_DIM * OUTPUT_DIM)
    bytes_accessed = (batch * INPUT_DIM * 2            # x reads (bf16)
                      + 2 * batch * OUTPUT_DIM * 2     # two bf16 head writebacks
                      + sum(a.size * a.dtype.itemsize
                            for a in (w_in, b_in, w_h, b_h,
                                      w_out, b_out, w_noise, b_noise)))

    out_fm, noise_fm = pl.pallas_call(
        fcnet_kernel,
        out_shape=(jax.ShapeDtypeStruct((OUTPUT_DIM, batch), OUT_DTYPE),
                   jax.ShapeDtypeStruct((OUTPUT_DIM, batch), OUT_DTYPE)),
        grid=grid,
        in_specs=[
            x_spec,                                         # batch-tiled activations
            resident((HIDDEN_DIM, INPUT_DIM)),              # W_in   (out, in) = PyTorch layout
            resident((HIDDEN_DIM, 1)),                      # b_in
            resident((N_HIDDEN, HIDDEN_DIM, HIDDEN_DIM)),   # W_h    stack
            resident((N_HIDDEN, HIDDEN_DIM, 1)),            # b_h    stack
            resident((OUTPUT_DIM, HIDDEN_DIM)),             # W_out
            resident((OUTPUT_DIM, 1)),                      # b_out
            resident((OUTPUT_DIM, HIDDEN_DIM)),             # W_noise
            resident((OUTPUT_DIM, 1)),                      # b_noise
        ],
        out_specs=(head_spec, head_spec),
        compiler_params=pltpu.CompilerParams(
            dimension_semantics=("parallel",),              # v7x: shard batch over 2 TCs
            vmem_limit_bytes=_VMEM_LIMIT),
        cost_estimate=pl.CostEstimate(flops=flops, transcendentals=0,
                                      bytes_accessed=bytes_accessed),
    )(x, w_in, b_in, w_h, b_h, w_out, b_out, w_noise, b_noise)

    # Restore the module's (batch, output_dim) orientation.  Callers that can
    # consume feature-major bf16 directly should use out_fm / noise_fm and skip
    # these transposes -- they are the only post-kernel pass over the outputs.
    out = out_fm.T.astype(jnp.float32)
    noise = noise_fm.T.astype(jnp.float32)
    return out, noise


def init_params(key):
    """Deterministic synthetic parameters; weights in PyTorch nn.Linear layout
    (out_features, in_features), biases stored as (out_features, 1)."""
    ks = jax.random.split(key, 8)
    w_in = (jax.random.normal(ks[0], (HIDDEN_DIM, INPUT_DIM), jnp.float32) * 0.1
            ).astype(COMPUTE_DTYPE)
    b_in = jax.random.normal(ks[1], (HIDDEN_DIM, 1), jnp.float32) * 0.1
    w_h = (jax.random.normal(ks[2], (N_HIDDEN, HIDDEN_DIM, HIDDEN_DIM), jnp.float32) * 0.1
           ).astype(COMPUTE_DTYPE)
    b_h = jax.random.normal(ks[3], (N_HIDDEN, HIDDEN_DIM, 1), jnp.float32) * 0.1
    w_noise = (jax.random.normal(ks[4], (OUTPUT_DIM, HIDDEN_DIM), jnp.float32) * 0.1
               ).astype(COMPUTE_DTYPE)
    b_noise = jax.random.normal(ks[5], (OUTPUT_DIM, 1), jnp.float32) * 0.1
    w_out = (jax.random.normal(ks[6], (OUTPUT_DIM, HIDDEN_DIM), jnp.float32) * 0.1
             ).astype(COMPUTE_DTYPE)
    b_out = jax.random.normal(ks[7], (OUTPUT_DIM, 1), jnp.float32) * 0.1
    return w_in, b_in, w_h, b_h, w_noise, b_noise, w_out, b_out


def fcnet_reference(x, w_in, b_in, w_h, b_h, w_noise, b_noise, w_out, b_out):
    """Pure-JAX reference using the same bf16-in / f32-accumulate recipe."""
    xc = x.astype(COMPUTE_DTYPE)
    h = jnp.maximum(
        jnp.dot(xc, w_in.T, preferred_element_type=jnp.float32) + b_in.T, 0.0)
    for i in range(N_HIDDEN):
        h = jnp.maximum(
            jnp.dot(h.astype(COMPUTE_DTYPE), w_h[i].T,
                    preferred_element_type=jnp.float32) + b_h[i].T, 0.0)
    hc = h.astype(COMPUTE_DTYPE)
    out = jnp.dot(hc, w_out.T, preferred_element_type=jnp.float32) + b_out.T
    noise = jnp.dot(hc, w_noise.T, preferred_element_type=jnp.float32) + b_noise.T
    return out, noise


if __name__ == "__main__":
    key = jax.random.PRNGKey(0)
    k_x, k_p = jax.random.split(key)
    params = init_params(k_p)

    # batch=8: tiny single-tile path; batch=1000: multi-tile + ragged last tile.
    for batch in (8, 1000):
        x = jax.random.normal(k_x, (batch, INPUT_DIM), jnp.float32)
        out, noise = fcnet_forward(x, *params)
        jax.block_until_ready((out, noise))

        ref_out, ref_noise = fcnet_reference(x, *params)
        assert out.shape == (batch, OUTPUT_DIM)
        assert noise.shape == (batch, OUTPUT_DIM)
        assert jnp.allclose(out, ref_out, atol=2e-2, rtol=2e-2), \
            f"out mismatch at batch={batch}"
        assert jnp.allclose(noise, ref_noise, atol=2e-2, rtol=2e-2), \
            f"noise mismatch at batch={batch}"

    print("KERNEL_OK")
</pallas_src>

<mosaic_0001>
module attributes {stable_mosaic.version = 11 : i64} {
  func.func @fcnet_kernel(%arg0: i32, %arg1: memref<8x16xbf16, #tpu.memory_space<vmem>>, %arg2: memref<32x16xbf16, #tpu.memory_space<vmem>>, %arg3: memref<32x1xf32, #tpu.memory_space<vmem>>, %arg4: memref<2x32x32xbf16, #tpu.memory_space<vmem>>, %arg5: memref<2x32x1xf32, #tpu.memory_space<vmem>>, %arg6: memref<4x32xbf16, #tpu.memory_space<vmem>>, %arg7: memref<4x1xf32, #tpu.memory_space<vmem>>, %arg8: memref<4x32xbf16, #tpu.memory_space<vmem>>, %arg9: memref<4x1xf32, #tpu.memory_space<vmem>>, %arg10: memref<4x8xbf16, #tpu.memory_space<vmem>>, %arg11: memref<4x8xbf16, #tpu.memory_space<vmem>>) attributes {dimension_semantics = [#tpu.dimension_semantics<parallel>], iteration_bounds = array<i64: 1>, scalar_prefetch = 0 : i64, scratch_operands = 0 : i64, tpu.core_type = #tpu.core_type<tc>, window_params = [{transform_indices = @transform_0, window_bounds = array<i64: 8, 16>}, {pipeline_mode = #tpu.pipeline_mode<synchronous>, transform_indices = @transform_1, window_bounds = array<i64: 32, 16>}, {pipeline_mode = #tpu.pipeline_mode<synchronous>, transform_indices = @transform_2, window_bounds = array<i64: 32, 1>}, {pipeline_mode = #tpu.pipeline_mode<synchronous>, transform_indices = @transform_3, window_bounds = array<i64: 2, 32, 32>}, {pipeline_mode = #tpu.pipeline_mode<synchronous>, transform_indices = @transform_4, window_bounds = array<i64: 2, 32, 1>}, {pipeline_mode = #tpu.pipeline_mode<synchronous>, transform_indices = @transform_5, window_bounds = array<i64: 4, 32>}, {pipeline_mode = #tpu.pipeline_mode<synchronous>, transform_indices = @transform_6, window_bounds = array<i64: 4, 1>}, {pipeline_mode = #tpu.pipeline_mode<synchronous>, transform_indices = @transform_7, window_bounds = array<i64: 4, 32>}, {pipeline_mode = #tpu.pipeline_mode<synchronous>, transform_indices = @transform_8, window_bounds = array<i64: 4, 1>}, {transform_indices = @transform_9, window_bounds = array<i64: 4, 8>}, {transform_indices = @transform_10, window_bounds = array<i64: 4, 8>}]} {
    %c0 = arith.constant 0 : index
    %c0_0 = arith.constant 0 : index
    %0 = vector.load %arg2[%c0, %c0_0] : memref<32x16xbf16, #tpu.memory_space<vmem>>, vector<32x16xbf16>
    %c0_1 = arith.constant 0 : index
    %c0_2 = arith.constant 0 : index
    %1 = vector.load %arg1[%c0_1, %c0_2] : memref<8x16xbf16, #tpu.memory_space<vmem>>, vector<8x16xbf16>
    %cst = arith.constant dense<0.000000e+00> : vector<32x8xf32>
    %2 = tpu.matmul %0, %1, %cst {dimension_numbers = #tpu.dot_dimension_numbers<[1], [1], [0], [0], [0, 0, 1, 0], [], []>} : vector<32x16xbf16>, vector<8x16xbf16>, vector<32x8xf32> -> vector<32x8xf32>
    %c0_3 = arith.constant 0 : index
    %c0_4 = arith.constant 0 : index
    %3 = vector.load %arg3[%c0_3, %c0_4] : memref<32x1xf32, #tpu.memory_space<vmem>>, vector<32x1xf32>
    %4 = vector.broadcast %3 : vector<32x1xf32> to vector<32x8xf32>
    %5 = arith.addf %2, %4 : vector<32x8xf32>
    %cst_5 = arith.constant 0.000000e+00 : f32
    %6 = vector.broadcast %cst_5 : f32 to vector<32x8xf32>
    %7 = arith.maximumf %5, %6 : vector<32x8xf32>
    %c0_6 = arith.constant 0 : index
    %c0_7 = arith.constant 0 : index
    %c0_8 = arith.constant 0 : index
    %8 = vector.load %arg4[%c0_6, %c0_7, %c0_8] : memref<2x32x32xbf16, #tpu.memory_space<vmem>>, vector<1x32x32xbf16>
    %9 = vector.shape_cast %8 : vector<1x32x32xbf16> to vector<32x32xbf16>
    %10 = arith.truncf %7 : vector<32x8xf32> to vector<32x8xbf16>
    %cst_9 = arith.constant dense<0.000000e+00> : vector<32x8xf32>
    %11 = tpu.matmul %9, %10, %cst_9 {dimension_numbers = #tpu.dot_dimension_numbers<[1], [0], [0], [1], [0, 0, 1, 1], [], []>} : vector<32x32xbf16>, vector<32x8xbf16>, vector<32x8xf32> -> vector<32x8xf32>
    %c0_10 = arith.constant 0 : index
    %c0_11 = arith.constant 0 : index
    %c0_12 = arith.constant 0 : index
    %12 = vector.load %arg5[%c0_10, %c0_11, %c0_12] : memref<2x32x1xf32, #tpu.memory_space<vmem>>, vector<1x32x1xf32>
    %13 = vector.shape_cast %12 : vector<1x32x1xf32> to vector<32x1xf32>
    %14 = vector.broadcast %13 : vector<32x1xf32> to vector<32x8xf32>
    %15 = arith.addf %11, %14 : vector<32x8xf32>
    %cst_13 = arith.constant 0.000000e+00 : f32
    %16 = vector.broadcast %cst_13 : f32 to vector<32x8xf32>
    %17 = arith.maximumf %15, %16 : vector<32x8xf32>
    %c1 = arith.constant 1 : index
    %c0_14 = arith.constant 0 : index
    %c0_15 = arith.constant 0 : index
    %18 = vector.load %arg4[%c1, %c0_14, %c0_15] : memref<2x32x32xbf16, #tpu.memory_space<vmem>>, vector<1x32x32xbf16>
    %19 = vector.shape_cast %18 : vector<1x32x32xbf16> to vector<32x32xbf16>
    %20 = arith.truncf %17 : vector<32x8xf32> to vector<32x8xbf16>
    %cst_16 = arith.constant dense<0.000000e+00> : vector<32x8xf32>
    %21 = tpu.matmul %19, %20, %cst_16 {dimension_numbers = #tpu.dot_dimension_numbers<[1], [0], [0], [1], [0, 0, 1, 1], [], []>} : vector<32x32xbf16>, vector<32x8xbf16>, vector<32x8xf32> -> vector<32x8xf32>
    %c1_17 = arith.constant 1 : index
    %c0_18 = arith.constant 0 : index
    %c0_19 = arith.constant 0 : index
    %22 = vector.load %arg5[%c1_17, %c0_18, %c0_19] : memref<2x32x1xf32, #tpu.memory_space<vmem>>, vector<1x32x1xf32>
    %23 = vector.shape_cast %22 : vector<1x32x1xf32> to vector<32x1xf32>
    %24 = vector.broadcast %23 : vector<32x1xf32> to vector<32x8xf32>
    %25 = arith.addf %21, %24 : vector<32x8xf32>
    %cst_20 = arith.constant 0.000000e+00 : f32
    %26 = vector.broadcast %cst_20 : f32 to vector<32x8xf32>
    %27 = arith.maximumf %25, %26 : vector<32x8xf32>
    %28 = arith.truncf %27 : vector<32x8xf32> to vector<32x8xbf16>
    %c0_21 = arith.constant 0 : index
    %c0_22 = arith.constant 0 : index
    %29 = vector.load %arg6[%c0_21, %c0_22] : memref<4x32xbf16, #tpu.memory_space<vmem>>, vector<4x32xbf16>
    %cst_23 = arith.constant dense<0.000000e+00> : vector<4x8xf32>
    %30 = tpu.matmul %29, %28, %cst_23 {dimension_numbers = #tpu.dot_dimension_numbers<[1], [0], [0], [1], [0, 0, 1, 1], [], []>} : vector<4x32xbf16>, vector<32x8xbf16>, vector<4x8xf32> -> vector<4x8xf32>
    %c0_24 = arith.constant 0 : index
    %c0_25 = arith.constant 0 : index
    %31 = vector.load %arg7[%c0_24, %c0_25] : memref<4x1xf32, #tpu.memory_space<vmem>>, vector<4x1xf32>
    %32 = vector.broadcast %31 : vector<4x1xf32> to vector<4x8xf32>
    %33 = arith.addf %30, %32 : vector<4x8xf32>
    %34 = arith.truncf %33 : vector<4x8xf32> to vector<4x8xbf16>
    %c0_26 = arith.constant 0 : index
    %c0_27 = arith.constant 0 : index
    %35 = vector.load %arg10[%c0_26, %c0_27] : memref<4x8xbf16, #tpu.memory_space<vmem>>, vector<4x8xbf16>
    tpu.vector_store %arg10[%c0_26, %c0_27], %34 {strides = array<i32>} : memref<4x8xbf16, #tpu.memory_space<vmem>>, vector<4x8xbf16>,
    %c0_28 = arith.constant 0 : index
    %c0_29 = arith.constant 0 : index
    %36 = vector.load %arg8[%c0_28, %c0_29] : memref<4x32xbf16, #tpu.memory_space<vmem>>, vector<4x32xbf16>
    %cst_30 = arith.constant dense<0.000000e+00> : vector<4x8xf32>
    %37 = tpu.matmul %36, %28, %cst_30 {dimension_numbers = #tpu.dot_dimension_numbers<[1], [0], [0], [1], [0, 0, 1, 1], [], []>} : vector<4x32xbf16>, vector<32x8xbf16>, vector<4x8xf32> -> vector<4x8xf32>
    %c0_31 = arith.constant 0 : index
    %c0_32 = arith.constant 0 : index
    %38 = vector.load %arg9[%c0_31, %c0_32] : memref<4x1xf32, #tpu.memory_space<vmem>>, vector<4x1xf32>
    %39 = vector.broadcast %38 : vector<4x1xf32> to vector<4x8xf32>
    %40 = arith.addf %37, %39 : vector<4x8xf32>
    %41 = arith.truncf %40 : vector<4x8xf32> to vector<4x8xbf16>
    %c0_33 = arith.constant 0 : index
    %c0_34 = arith.constant 0 : index
    %42 = vector.load %arg11[%c0_33, %c0_34] : memref<4x8xbf16, #tpu.memory_space<vmem>>, vector<4x8xbf16>
    tpu.vector_store %arg11[%c0_33, %c0_34], %41 {strides = array<i32>} : memref<4x8xbf16, #tpu.memory_space<vmem>>, vector<4x8xbf16>,
    return
  }
  func.func @transform_0(%arg0: i32) -> (i32, i32) {
    %c0_i32 = arith.constant 0 : i32
    %c0_i32_0 = arith.constant 0 : i32
    return %arg0, %c0_i32 : i32, i32
  }
  func.func @transform_1(%arg0: i32) -> (i32, i32) {
    %c0_i32 = arith.constant 0 : i32
    %c0_i32_0 = arith.constant 0 : i32
    %c0_i32_1 = arith.constant 0 : i32
    return %c0_i32, %c0_i32_0 : i32, i32
  }
  func.func @transform_2(%arg0: i32) -> (i32, i32) {
    %c0_i32 = arith.constant 0 : i32
    %c0_i32_0 = arith.constant 0 : i32
    %c0_i32_1 = arith.constant 0 : i32
    return %c0_i32, %c0_i32_0 : i32, i32
  }
  func.func @transform_3(%arg0: i32) -> (i32, i32, i32) {
    %c0_i32 = arith.constant 0 : i32
    %c0_i32_0 = arith.constant 0 : i32
    %c0_i32_1 = arith.constant 0 : i32
    %c0_i32_2 = arith.constant 0 : i32
    return %c0_i32, %c0_i32_0, %c0_i32_1 : i32, i32, i32
  }
  func.func @transform_4(%arg0: i32) -> (i32, i32, i32) {
    %c0_i32 = arith.constant 0 : i32
    %c0_i32_0 = arith.constant 0 : i32
    %c0_i32_1 = arith.constant 0 : i32
    %c0_i32_2 = arith.constant 0 : i32
    return %c0_i32, %c0_i32_0, %c0_i32_1 : i32, i32, i32
  }
  func.func @transform_5(%arg0: i32) -> (i32, i32) {
    %c0_i32 = arith.constant 0 : i32
    %c0_i32_0 = arith.constant 0 : i32
    %c0_i32_1 = arith.constant 0 : i32
    return %c0_i32, %c0_i32_0 : i32, i32
  }
  func.func @transform_6(%arg0: i32) -> (i32, i32) {
    %c0_i32 = arith.constant 0 : i32
    %c0_i32_0 = arith.constant 0 : i32
    %c0_i32_1 = arith.constant 0 : i32
    return %c0_i32, %c0_i32_0 : i32, i32
  }
  func.func @transform_7(%arg0: i32) -> (i32, i32) {
    %c0_i32 = arith.constant 0 : i32
    %c0_i32_0 = arith.constant 0 : i32
    %c0_i32_1 = arith.constant 0 : i32
    return %c0_i32, %c0_i32_0 : i32, i32
  }
  func.func @transform_8(%arg0: i32) -> (i32, i32) {
    %c0_i32 = arith.constant 0 : i32
    %c0_i32_0 = arith.constant 0 : i32
    %c0_i32_1 = arith.constant 0 : i32
    return %c0_i32, %c0_i32_0 : i32, i32
  }
  func.func @transform_9(%arg0: i32) -> (i32, i32) {
    %c0_i32 = arith.constant 0 : i32
    %c0_i32_0 = arith.constant 0 : i32
    return %c0_i32, %arg0 : i32, i32
  }
  func.func @transform_10(%arg0: i32) -> (i32, i32) {
    %c0_i32 = arith.constant 0 : i32
    %c0_i32_0 = arith.constant 0 : i32
    return %c0_i32, %arg0 : i32, i32
  }
}

</mosaic_0001>

<llo_original>
// kernel: fcnet_forward.1
$region0: #{fcnet_forward.1}
  #allocation0 [shape = 'u32[]', space=smem, size = 0x4, offset = 0x4, fixed_abs, tag = 'smem constant byte address 0x4 - core index']
  #allocation1 [shape = 'u32[144,128]{1,0:T(1,128)}', space=vmem, size = 0x12000, scoped, tag = 'internal scratch']
  %s0 = inlined_call_operand.vmem [shape: bf16[8,16], index: 0, kind: input, shape index: {}]
  %s1 = inlined_call_operand.vmem [shape: bf16[32,16], index: 1, kind: input, shape index: {}]
  %s2 = inlined_call_operand.vmem [shape: f32[32,1], index: 2, kind: input, shape index: {}]
  %s3 = inlined_call_operand.vmem [shape: bf16[2,32,32], index: 3, kind: input, shape index: {}]
  %s4 = inlined_call_operand.vmem [shape: f32[2,32,1], index: 4, kind: input, shape index: {}]
  %s5 = inlined_call_operand.vmem [shape: bf16[4,32], index: 5, kind: input, shape index: {}]
  %s6 = inlined_call_operand.vmem [shape: f32[4,1], index: 6, kind: input, shape index: {}]
  %s7 = inlined_call_operand.vmem [shape: bf16[4,32], index: 7, kind: input, shape index: {}]
  %s8 = inlined_call_operand.vmem [shape: f32[4,1], index: 8, kind: input, shape index: {}]
  %s9 = inlined_call_operand.vmem [shape: bf16[4,8], index: 9, kind: output, shape index: {0}]
  %s10 = inlined_call_operand.vmem [shape: bf16[4,8], index: 10, kind: output, shape index: {1}]
  %11 = xla_tuple %s9, %s10
  %s12 = sld [smem:[#allocation0]]
  $region54: #{fcnet_forward.1} parent=0
    _
  %s14 = ssub.s32 1, %s12
  %s15 = scalar_select 0, %s14, %s12
  // Predicated region
  $region2: #{fcnet_forward.1} parent=0 // pred_check
    _
  $region3: #{fcnet_forward.1} parent=0 // pred_check_branch
    %17 = sbr.rel (0) target = $region5
  $region4: #{fcnet_forward.1} parent=0 // pred_region
    _
  $region5: #{fcnet_forward.1} parent=0 // pred_fallthru
    _
  // Predicated region
  $region6: #{fcnet_forward.1} parent=0 // pred_check
    _
  $region7: #{fcnet_forward.1} parent=0 // pred_check_branch
    %19 = sbr.rel (0) target = $region9
  $region8: #{fcnet_forward.1} parent=0 // pred_region
    _
  $region9: #{fcnet_forward.1} parent=0 // pred_fallthru
    _
  // Predicated region
  $region10: #{fcnet_forward.1} parent=0 // pred_check
    _
  $region11: #{fcnet_forward.1} parent=0 // pred_check_branch
    %21 = sbr.rel (0) target = $region13
  $region12: #{fcnet_forward.1} parent=0 // pred_region
    _
  $region13: #{fcnet_forward.1} parent=0 // pred_fallthru
    _
  // Predicated region
  $region14: #{fcnet_forward.1} parent=0 // pred_check
    _
  $region15: #{fcnet_forward.1} parent=0 // pred_check_branch
    %23 = sbr.rel (0) target = $region17
  $region16: #{fcnet_forward.1} parent=0 // pred_region
    _
  $region17: #{fcnet_forward.1} parent=0 // pred_fallthru
    _
  // Predicated region
  $region18: #{fcnet_forward.1} parent=0 // pred_check
    _
  $region19: #{fcnet_forward.1} parent=0 // pred_check_branch
    %25 = sbr.rel (0) target = $region21
  $region20: #{fcnet_forward.1} parent=0 // pred_region
    _
  $region21: #{fcnet_forward.1} parent=0 // pred_fallthru
    _
  // Predicated region
  $region22: #{fcnet_forward.1} parent=0 // pred_check
    _
  $region23: #{fcnet_forward.1} parent=0 // pred_check_branch
    %27 = sbr.rel (0) target = $region25
  $region24: #{fcnet_forward.1} parent=0 // pred_region
    _
  $region25: #{fcnet_forward.1} parent=0 // pred_fallthru
    _
  // Predicated region
  $region26: #{fcnet_forward.1} parent=0 // pred_check
    _
  $region27: #{fcnet_forward.1} parent=0 // pred_check_branch
    %29 = sbr.rel (0) target = $region29
  $region28: #{fcnet_forward.1} parent=0 // pred_region
    _
  $region29: #{fcnet_forward.1} parent=0 // pred_fallthru
    _
  // Predicated region
  $region30: #{fcnet_forward.1} parent=0 // pred_check
    _
  $region31: #{fcnet_forward.1} parent=0 // pred_check_branch
    %31 = sbr.rel (0) target = $region33
  $region32: #{fcnet_forward.1} parent=0 // pred_region
    _
  $region33: #{fcnet_forward.1} parent=0 // pred_fallthru
    _
  // Predicated region
  $region34: #{fcnet_forward.1} parent=0 // pred_check
    _
  $region35: #{fcnet_forward.1} parent=0 // pred_check_branch
    %33 = sbr.rel (0) target = $region37
  $region36: #{fcnet_forward.1} parent=0 // pred_region
    _
  $region37: #{fcnet_forward.1} parent=0 // pred_fallthru
    _
  %v35 = vld [vmem:[%s1] sm:$0xf]
  %v36 = vld [vmem:[%s1 + $0x4] sm:$0xf]
  %v37 = vld [vmem:[%s1 + $0x8] sm:$0xf]
  %v38 = vld [vmem:[%s1 + $0xc] sm:$0xf]
  %v39 = vld [vmem:[%s0] sm:$0xf]
  %v40 = vld [vmem:[%s2] sm:$0xff]
  %v41 = vld [vmem:[%s2 + $0x8] sm:$0xff]
  %v42 = vld [vmem:[%s2 + $0x10] sm:$0xff]
  %v43 = vld [vmem:[%s2 + $0x18] sm:$0xff]
  %45 = vset.pattern.permute.xlu0 0
  %46 = vperm.xlu0 %45, %v40
  %v47 = vpop.permute.xlu0 %46
  %50 = vset.pattern.permute.xlu0 0
  %51 = vperm.xlu0 %50, %v41
  %v52 = vpop.permute.xlu0 %51
  %55 = vset.pattern.permute.xlu0 0
  %56 = vperm.xlu0 %55, %v42
  %v57 = vpop.permute.xlu0 %56
  %60 = vset.pattern.permute.xlu0 0
  %61 = vperm.xlu0 %60, %v43
  %v62 = vpop.permute.xlu0 %61
  %v68 = vunpack.c.l.b16 %v35
  %v69 = vunpack.c.l.b16 %v36
  %v70 = vunpack.c.l.b16 %v37
  %v71 = vunpack.c.l.b16 %v38
  %v72 = vpack.c.b16 %v69, %v68
  %v73 = vpack.c.b16 %v71, %v70
  %vm74 = vcmask 130048
  %v76 = vsel %vm74, %v72, 0
  %v79 = vsel %vm74, %v73, 0
  %v82 = vsel %vm74, %v39, 0
  %84 = vmatprep.subr.bf16.mxu0 0
  %85 = vmatpush1.bf16.xpose.msra.mxu0 %v82
  %86 = vmatprep.subr.bf16.mxu0 0
  %87 = vmatpush1.bf16.xpose.msra.mxu0 0
  %88 = vmatprep.subr.bf16.mxu0 0
  %89 = vmatpush1.bf16.xpose.msra.mxu0 0
  %90 = vmatprep.subr.bf16.mxu0 0
  %91 = vmatpush1.bf16.xpose.msra.mxu0 0
  %92 = vmatprep.subr.bf16.mxu0 0
  %93 = vmatpush1.bf16.xpose.msra.mxu0 0
  %94 = vmatprep.subr.bf16.mxu0 0
  %95 = vmatpush1.bf16.xpose.msra.mxu0 0
  %96 = vmatprep.subr.bf16.mxu0 0
  %97 = vmatpush1.bf16.xpose.msra.mxu0 0
  %98 = vmatprep.subr.bf16.mxu0 0
  %99 = vmatpush1.bf16.xpose.msra.mxu0 0
  %100 = vmatprep.subr.bf16.mxu0 0
  %101 = vmatpush1.bf16.xpose.msra.mxu0 0
  %102 = vmatprep.subr.bf16.mxu0 0
  %103 = vmatpush1.bf16.xpose.msra.mxu0 0
  %104 = vmatprep.subr.bf16.mxu0 0
  %105 = vmatpush1.bf16.xpose.msra.mxu0 0
  %106 = vmatprep.subr.bf16.mxu0 0
  %107 = vmatpush1.bf16.xpose.msra.mxu0 0
  %108 = vmatprep.subr.bf16.mxu0 0
  %109 = vmatpush1.bf16.xpose.msra.mxu0 0
  %110 = vmatprep.subr.bf16.mxu0 0
  %111 = vmatpush1.bf16.xpose.msra.mxu0 0
  %112 = vmatprep.subr.bf16.mxu0 0
  %113 = vmatpush1.bf16.xpose.msra.mxu0 0
  %114 = vmatprep.subr.bf16.mxu0 0
  %115 = vmatpush1.bf16.xpose.msra.mxu0 0
  %116 = vmatprep.mubr.bf16.mxu0 0
  %117 = vmatmul.mubr.bf16.gmra.mrb[0].mxu0 %v76
  %v118 = vpop.f32.mrb[0].mxu0
  %v119 = vadd.f32 %v47, %v118
  %v120 = vpop.f32.mrb[0].mxu0
  %v121 = vpop.f32.mrb[0].mxu0
  %v122 = vadd.f32 %v52, %v121
  %v123 = vpop.f32.mrb[0].mxu0
  %124 = vmatprep.mubr.bf16.mxu0 0
  %125 = vmatmul.mubr.bf16.gmra.mrb[0].mxu0 %v79
  %v126 = vpop.f32.mrb[0].mxu0
  %v127 = vadd.f32 %v57, %v126
  %v128 = vpop.f32.mrb[0].mxu0
  %v129 = vpop.f32.mrb[0].mxu0
  %v130 = vadd.f32 %v62, %v129
  %v131 = vpop.f32.mrb[0].mxu0
  %132 = vdwg.mxu0
  %v133 = vmax.f32 %v119, 0.0
  %v134 = vmax.f32 %v122, 0.0
  %v135 = vmax.f32 %v127, 0.0
  %v136 = vmax.f32 %v130, 0.0
  %v137 = vld [vmem:[%s3] sm:$0xf]
  %v138 = vld [vmem:[%s3 + $0x4] sm:$0xf]
  %v139 = vld [vmem:[%s3 + $0x8] sm:$0xf]
  %v140 = vld [vmem:[%s3 + $0xc] sm:$0xf]
  %v141 = vpack.c.bf16 %v134, %v133
  %v142 = vpack.c.bf16 %v136, %v135
  %v143 = vld [vmem:[%s4] sm:$0xff]
  %v144 = vld [vmem:[%s4 + $0x8] sm:$0xff]
  %v145 = vld [vmem:[%s4 + $0x10] sm:$0xff]
  %v146 = vld [vmem:[%s4 + $0x18] sm:$0xff]
  %148 = vset.pattern.permute.xlu0 0
  %149 = vperm.xlu0 %148, %v143
  %v150 = vpop.permute.xlu0 %149
  %153 = vset.pattern.permute.xlu0 0
  %154 = vperm.xlu0 %153, %v144
  %v155 = vpop.permute.xlu0 %154
  %158 = vset.pattern.permute.xlu0 0
  %159 = vperm.xlu0 %158, %v145
  %v160 = vpop.permute.xlu0 %159
  %163 = vset.pattern.permute.xlu0 0
  %164 = vperm.xlu0 %163, %v146
  %v165 = vpop.permute.xlu0 %164
  %v171 = vunpack.c.l.b16 %v137
  %v172 = vunpack.c.l.b16 %v138
  %v173 = vunpack.c.l.b16 %v139
  %v174 = vunpack.c.l.b16 %v140
  %v175 = vpack.c.b16 %v172, %v171
  %v176 = vpack.c.b16 %v174, %v173
  %vm177 = vcmask 261120
  %v179 = vsel %vm177, %v175, 0
  %v182 = vsel %vm177, %v176, 0
  %184 = vmatprep.subr.bf16.mxu0 0
  %185 = vmatpush1.bf16.msra.mxu0 %v141
  %186 = vmatprep.subr.bf16.mxu0 0
  %187 = vmatpush1.bf16.msra.mxu0 %v142
  %188 = vmatprep.subr.bf16.mxu0 0
  %189 = vmatpush1.bf16.msra.mxu0 0
  %190 = vmatprep.subr.bf16.mxu0 0
  %191 = vmatpush1.bf16.msra.mxu0 0
  %192 = vmatprep.subr.bf16.mxu0 0
  %193 = vmatpush1.bf16.msra.mxu0 0
  %194 = vmatprep.subr.bf16.mxu0 0
  %195 = vmatpush1.bf16.msra.mxu0 0
  %196 = vmatprep.subr.bf16.mxu0 0
  %197 = vmatpush1.bf16.msra.mxu0 0
  %198 = vmatprep.subr.bf16.mxu0 0
  %199 = vmatpush1.bf16.msra.mxu0 0
  %200 = vmatprep.subr.bf16.mxu0 0
  %201 = vmatpush1.bf16.msra.mxu0 0
  %202 = vmatprep.subr.bf16.mxu0 0
  %203 = vmatpush1.bf16.msra.mxu0 0
  %204 = vmatprep.subr.bf16.mxu0 0
  %205 = vmatpush1.bf16.msra.mxu0 0
  %206 = vmatprep.subr.bf16.mxu0 0
  %207 = vmatpush1.bf16.msra.mxu0 0
  %208 = vmatprep.subr.bf16.mxu0 0
  %209 = vmatpush1.bf16.msra.mxu0 0
  %210 = vmatprep.subr.bf16.mxu0 0
  %211 = vmatpush1.bf16.msra.mxu0 0
  %212 = vmatprep.subr.bf16.mxu0 0
  %213 = vmatpush1.bf16.msra.mxu0 0
  %214 = vmatprep.subr.bf16.mxu0 0
  %215 = vmatpush1.bf16.msra.mxu0 0
  %216 = vmatprep.mubr.bf16.mxu0 0
  %217 = vmatmul.mubr.bf16.gmra.mrb[0].mxu0 %v179
  %v218 = vpop.f32.mrb[0].mxu0
  %v219 = vadd.f32 %v150, %v218
  %v220 = vpop.f32.mrb[0].mxu0
  %v221 = vpop.f32.mrb[0].mxu0
  %v222 = vadd.f32 %v155, %v221
  %v223 = vpop.f32.mrb[0].mxu0
  %224 = vmatprep.mubr.bf16.mxu0 0
  %225 = vmatmul.mubr.bf16.gmra.mrb[0].mxu0 %v182
  %v226 = vpop.f32.mrb[0].mxu0
  %v227 = vadd.f32 %v160, %v226
  %v228 = vpop.f32.mrb[0].mxu0
  %v229 = vpop.f32.mrb[0].mxu0
  %v230 = vadd.f32 %v165, %v229
  %v231 = vpop.f32.mrb[0].mxu0
  %232 = vdwg.mxu0
  %v233 = vmax.f32 %v219, 0.0
  %v234 = vmax.f32 %v222, 0.0
  %v235 = vmax.f32 %v227, 0.0
  %v236 = vmax.f32 %v230, 0.0
  %s237 = scalar_lea.vmem %s3, 16
  %v238 = vld [vmem:[%s237] sm:$0xf]
  %v239 = vld [vmem:[%s237 + $0x4] sm:$0xf]
  %v240 = vld [vmem:[%s237 + $0x8] sm:$0xf]
  %v241 = vld [vmem:[%s237 + $0xc] sm:$0xf]
  %v242 = vpack.c.bf16 %v234, %v233
  %v243 = vpack.c.bf16 %v236, %v235
  %s244 = scalar_lea.vmem %s4, 32
  %v245 = vld [vmem:[%s244] sm:$0xff]
  %v246 = vld [vmem:[%s244 + $0x8] sm:$0xff]
  %v247 = vld [vmem:[%s244 + $0x10] sm:$0xff]
  %v248 = vld [vmem:[%s244 + $0x18] sm:$0xff]
  %250 = vset.pattern.permute.xlu0 0
  %251 = vperm.xlu0 %250, %v245
  %v252 = vpop.permute.xlu0 %251
  %255 = vset.pattern.permute.xlu0 0
  %256 = vperm.xlu0 %255, %v246
  %v257 = vpop.permute.xlu0 %256
  %260 = vset.pattern.permute.xlu0 0
  %261 = vperm.xlu0 %260, %v247
  %v262 = vpop.permute.xlu0 %261
  %265 = vset.pattern.permute.xlu0 0
  %266 = vperm.xlu0 %265, %v248
  %v267 = vpop.permute.xlu0 %266
  %v273 = vunpack.c.l.b16 %v238
  %v274 = vunpack.c.l.b16 %v239
  %v275 = vunpack.c.l.b16 %v240
  %v276 = vunpack.c.l.b16 %v241
  %v277 = vpack.c.b16 %v274, %v273
  %v278 = vpack.c.b16 %v276, %v275
  %v280 = vsel %vm177, %v277, 0
  %v283 = vsel %vm177, %v278, 0
  %285 = vmatprep.subr.bf16.mxu0 0
  %286 = vmatpush1.bf16.msra.mxu0 %v242
  %287 = vmatprep.subr.bf16.mxu0 0
  %288 = vmatpush1.bf16.msra.mxu0 %v243
  %289 = vmatprep.subr.bf16.mxu0 0
  %290 = vmatpush1.bf16.msra.mxu0 0
  %291 = vmatprep.subr.bf16.mxu0 0
  %292 = vmatpush1.bf16.msra.mxu0 0
  %293 = vmatprep.subr.bf16.mxu0 0
  %294 = vmatpush1.bf16.msra.mxu0 0
  %295 = vmatprep.subr.bf16.mxu0 0
  %296 = vmatpush1.bf16.msra.mxu0 0
  %297 = vmatprep.subr.bf16.mxu0 0
  %298 = vmatpush1.bf16.msra.mxu0 0
  %299 = vmatprep.subr.bf16.mxu0 0
  %300 = vmatpush1.bf16.msra.mxu0 0
  %301 = vmatprep.subr.bf16.mxu0 0
  %302 = vmatpush1.bf16.msra.mxu0 0
  %303 = vmatprep.subr.bf16.mxu0 0
  %304 = vmatpush1.bf16.msra.mxu0 0
  %305 = vmatprep.subr.bf16.mxu0 0
  %306 = vmatpush1.bf16.msra.mxu0 0
  %307 = vmatprep.subr.bf16.mxu0 0
  %308 = vmatpush1.bf16.msra.mxu0 0
  %309 = vmatprep.subr.bf16.mxu0 0
  %310 = vmatpush1.bf16.msra.mxu0 0
  %311 = vmatprep.subr.bf16.mxu0 0
  %312 = vmatpush1.bf16.msra.mxu0 0
  %313 = vmatprep.subr.bf16.mxu0 0
  %314 = vmatpush1.bf16.msra.mxu0 0
  %315 = vmatprep.subr.bf16.mxu0 0
  %316 = vmatpush1.bf16.msra.mxu0 0
  %317 = vmatprep.mubr.bf16.mxu0 0
  %318 = vmatmul.mubr.bf16.gmra.mrb[0].mxu0 %v280
  %v319 = vpop.f32.mrb[0].mxu0
  %v320 = vadd.f32 %v252, %v319
  %v321 = vpop.f32.mrb[0].mxu0
  %v322 = vpop.f32.mrb[0].mxu0
  %v323 = vadd.f32 %v257, %v322
  %v324 = vpop.f32.mrb[0].mxu0
  %325 = vmatprep.mubr.bf16.mxu0 0
  %326 = vmatmul.mubr.bf16.gmra.mrb[0].mxu0 %v283
  %v327 = vpop.f32.mrb[0].mxu0
  %v328 = vadd.f32 %v262, %v327
  %v329 = vpop.f32.mrb[0].mxu0
  %v330 = vpop.f32.mrb[0].mxu0
  %v331 = vadd.f32 %v267, %v330
  %v332 = vpop.f32.mrb[0].mxu0
  %333 = vdwg.mxu0
  %v334 = vmax.f32 %v320, 0.0
  %v335 = vmax.f32 %v323, 0.0
  %v336 = vmax.f32 %v328, 0.0
  %v337 = vmax.f32 %v331, 0.0
  %v338 = vpack.c.bf16 %v335, %v334
  %v339 = vpack.c.bf16 %v337, %v336
  %v340 = vld [vmem:[%s5] sm:$0x3]
  %v341 = vld [vmem:[%s6] sm:$0xf]
  %343 = vset.pattern.permute.xlu0 0
  %344 = vperm.xlu0 %343, %v341
  %v345 = vpop.permute.xlu0 %344
  %v348 = vsel %vm177, %v340, 0
  %350 = vmatprep.subr.bf16.mxu0 0
  %351 = vmatpush1.bf16.msra.mxu0 %v338
  %352 = vmatprep.subr.bf16.mxu0 0
  %353 = vmatpush1.bf16.msra.mxu0 %v339
  %354 = vmatprep.subr.bf16.mxu0 0
  %355 = vmatpush1.bf16.msra.mxu0 0
  %356 = vmatprep.subr.bf16.mxu0 0
  %357 = vmatpush1.bf16.msra.mxu0 0
  %358 = vmatprep.subr.bf16.mxu0 0
  %359 = vmatpush1.bf16.msra.mxu0 0
  %360 = vmatprep.subr.bf16.mxu0 0
  %361 = vmatpush1.bf16.msra.mxu0 0
  %362 = vmatprep.subr.bf16.mxu0 0
  %363 = vmatpush1.bf16.msra.mxu0 0
  %364 = vmatprep.subr.bf16.mxu0 0
  %365 = vmatpush1.bf16.msra.mxu0 0
  %366 = vmatprep.subr.bf16.mxu0 0
  %367 = vmatpush1.bf16.msra.mxu0 0
  %368 = vmatprep.subr.bf16.mxu0 0
  %369 = vmatpush1.bf16.msra.mxu0 0
  %370 = vmatprep.subr.bf16.mxu0 0
  %371 = vmatpush1.bf16.msra.mxu0 0
  %372 = vmatprep.subr.bf16.mxu0 0
  %373 = vmatpush1.bf16.msra.mxu0 0
  %374 = vmatprep.subr.bf16.mxu0 0
  %375 = vmatpush1.bf16.msra.mxu0 0
  %376 = vmatprep.subr.bf16.mxu0 0
  %377 = vmatpush1.bf16.msra.mxu0 0
  %378 = vmatprep.subr.bf16.mxu0 0
  %379 = vmatpush1.bf16.msra.mxu0 0
  %380 = vmatprep.subr.bf16.mxu0 0
  %381 = vmatpush1.bf16.msra.mxu0 0
  %382 = vmatprep.mubr.bf16.mxu0 0
  %383 = vmatmul.mubr.bf16.gmra.mrb[0].mxu0 %v348
  %v384 = vpop.f32.mrb[0].mxu0
  %v385 = vadd.f32 %v345, %v384
  %v386 = vpop.f32.mrb[0].mxu0
  %v387 = vpop.f32.mrb[0].mxu0
  %v388 = vpop.f32.mrb[0].mxu0
  %389 = vdwg.mxu0
  %v390 = vpack.c.bf16 %v385, %v385
  %vm391 = vcmask 58368
  %392 = vst.msk [vmem:[%s9] sm:$0x3] %vm391, %v390
  %v393 = vld [vmem:[%s7] sm:$0x3]
  %v394 = vld [vmem:[%s8] sm:$0xf]
  %396 = vset.pattern.permute.xlu0 0
  %397 = vperm.xlu0 %396, %v394
  %v398 = vpop.permute.xlu0 %397
  %v401 = vsel %vm177, %v393, 0
  %403 = vmatprep.subr.bf16.mxu0 0
  %404 = vmatpush1.bf16.msra.mxu0 %v338
  %405 = vmatprep.subr.bf16.mxu0 0
  %406 = vmatpush1.bf16.msra.mxu0 %v339
  %407 = vmatprep.subr.bf16.mxu0 0
  %408 = vmatpush1.bf16.msra.mxu0 0
  %409 = vmatprep.subr.bf16.mxu0 0
  %410 = vmatpush1.bf16.msra.mxu0 0
  %411 = vmatprep.subr.bf16.mxu0 0
  %412 = vmatpush1.bf16.msra.mxu0 0
  %413 = vmatprep.subr.bf16.mxu0 0
  %414 = vmatpush1.bf16.msra.mxu0 0
  %415 = vmatprep.subr.bf16.mxu0 0
  %416 = vmatpush1.bf16.msra.mxu0 0
  %417 = vmatprep.subr.bf16.mxu0 0
  %418 = vmatpush1.bf16.msra.mxu0 0
  %419 = vmatprep.subr.bf16.mxu0 0
  %420 = vmatpush1.bf16.msra.mxu0 0
  %421 = vmatprep.subr.bf16.mxu0 0
  %422 = vmatpush1.bf16.msra.mxu0 0
  %423 = vmatprep.subr.bf16.mxu0 0
  %424 = vmatpush1.bf16.msra.mxu0 0
  %425 = vmatprep.subr.bf16.mxu0 0
  %426 = vmatpush1.bf16.msra.mxu0 0
  %427 = vmatprep.subr.bf16.mxu0 0
  %428 = vmatpush1.bf16.msra.mxu0 0
  %429 = vmatprep.subr.bf16.mxu0 0
  %430 = vmatpush1.bf16.msra.mxu0 0
  %431 = vmatprep.subr.bf16.mxu0 0
  %432 = vmatpush1.bf16.msra.mxu0 0
  %433 = vmatprep.subr.bf16.mxu0 0
  %434 = vmatpush1.bf16.msra.mxu0 0
  %435 = vmatprep.mubr.bf16.mxu0 0
  %436 = vmatmul.mubr.bf16.gmra.mrb[0].mxu0 %v401
  %v437 = vpop.f32.mrb[0].mxu0
  %v438 = vadd.f32 %v398, %v437
  %v439 = vpop.f32.mrb[0].mxu0
  %v440 = vpop.f32.mrb[0].mxu0
  %v441 = vpop.f32.mrb[0].mxu0
  %442 = vdwg.mxu0
  %v443 = vpack.c.bf16 %v438, %v438
  %444 = vst.msk [vmem:[%s10] sm:$0x3] %vm391, %v443
  // Predicated region
  $region38: #{fcnet_forward.1} parent=0 // pred_check
    _
  $region39: #{fcnet_forward.1} parent=0 // pred_check_branch
    %446 = sbr.rel (0) target = $region41
  $region40: #{fcnet_forward.1} parent=0 // pred_region
    _
  $region41: #{fcnet_forward.1} parent=0 // pred_fallthru
    _
  // Predicated region
  $region42: #{fcnet_forward.1} parent=0 // pred_check
    _
  $region43: #{fcnet_forward.1} parent=0 // pred_check_branch
    %448 = sbr.rel (0) target = $region45
  $region44: #{fcnet_forward.1} parent=0 // pred_region
    _
  $region45: #{fcnet_forward.1} parent=0 // pred_fallthru
    _
  // Predicated region
  $region46: #{fcnet_forward.1} parent=0 // pred_check
    _
  $region47: #{fcnet_forward.1} parent=0 // pred_check_branch
    %450 = sbr.rel (0) target = $region49
  $region48: #{fcnet_forward.1} parent=0 // pred_region
    _
  $region49: #{fcnet_forward.1} parent=0 // pred_fallthru
    _
  // Predicated region
  $region50: #{fcnet_forward.1} parent=0 // pred_check
    _
  $region51: #{fcnet_forward.1} parent=0 // pred_check_branch
    %452 = sbr.rel (0) target = $region53
  $region52: #{fcnet_forward.1} parent=0 // pred_region
    _
  $region53: #{fcnet_forward.1} parent=0 // pred_fallthru
    _

</llo_original>
